<compile_context>
chip_gen: v7x
topology: tpu7x:2x2x1
jax: 0.10.0
libtpu: 0.0.40
codegen_flags: <defaults>
</compile_context>

<pallas_src>
import jax
import jax.numpy as jnp
from jax.experimental import pallas as pl
from jax.experimental.pallas import tpu as pltpu

_SUB = 8
_LANE = 128
_BT = _SUB * _LANE          # DLT systems per batch tile
_MAX_TILES_PER_STEP = 4     # batch tiles processed per grid step (large batches)


def _refined_reciprocal(p):
    """EUP approximate reciprocal + one Newton-Raphson step."""
    inv = pl.reciprocal(p, approx=True)
    return inv * (2.0 - p * inv)


def _solve_tile(ca_tile, hp_tile):
    """Solve 1024 DLT systems.

    ca_tile, hp_tile: (8, _SUB, _LANE) f32 (coordinate-major, batch on
    sublane x lane).  Returns a list of nine (_SUB, _LANE) tiles h0..h8.
    """
    x = [ca_tile[2 * i] for i in range(4)]
    y = [ca_tile[2 * i + 1] for i in range(4)]
    xp = [hp_tile[2 * i] for i in range(4)]
    yp = [hp_tile[2 * i + 1] for i in range(4)]
    one = jnp.ones_like(x[0])

    # TODO(synk): torch.linalg.pinv is SVD-based; Pallas has no SVD.  For the
    # (generically nonsingular) DLT system pinv(A) @ b == solve(A, b); for
    # degenerate corner configurations (e.g. collinear points) this exact
    # solve diverges from the least-squares pinv solution.
    #
    # Block-sparse DLT: both 4-equation half-systems share M = [x, y, 1]:
    #   P rows:  x*h0 + y*h1 + h2 - xp*x*h6 - xp*y*h7 =  yp
    #   Q rows:  x*h3 + y*h4 + h5 - yp*x*h6 - yp*y*h7 = -xp
    # Augmented 4x9 system, one (8,128) tile per element:
    #   cols 0..2 : shared M
    #   cols 3..5 : P coupling (-xp*x, -xp*y) and rhs (yp)
    #   cols 6..8 : Q coupling (-yp*x, -yp*y) and rhs (-xp)
    aug = []
    for i in range(4):
        nxp = -xp[i]
        nyp = -yp[i]
        aug.append([x[i], y[i], one,
                    nxp * x[i], nxp * y[i], yp[i],
                    nyp * x[i], nyp * y[i], nxp])

    # Forward elimination of the shared M block (rows 0..2 become the unit
    # upper-triangular pivot rows, row 3 becomes the 2x2 Schur system).
    # Per-lane partial pivoting via a running compare-and-swap chain.
    for k in range(3):
        best = jnp.abs(aug[k][k])
        for r in range(k + 1, 4):
            cand = jnp.abs(aug[r][k])
            swap = cand > best
            best = jnp.where(swap, cand, best)
            for c in range(k, 9):
                a_k = aug[k][c]
                a_r = aug[r][c]
                aug[k][c] = jnp.where(swap, a_r, a_k)
                aug[r][c] = jnp.where(swap, a_k, a_r)

        # Normalize pivot row (columns right of the pivot only).
        inv_p = _refined_reciprocal(aug[k][k])
        for c in range(k + 1, 9):
            aug[k][c] = aug[k][c] * inv_p

        # Eliminate column k from the rows below the pivot.
        for r in range(k + 1, 4):
            f = aug[r][k]
            for c in range(k + 1, 9):
                aug[r][c] = aug[r][c] - f * aug[k][c]

    # 2x2 Schur system for (h6, h7), Cramer's rule with one reciprocal.
    a00, a01, b0 = aug[3][3], aug[3][4], aug[3][5]
    a10, a11, b1 = aug[3][6], aug[3][7], aug[3][8]
    det = a00 * a11 - a01 * a10
    inv_det = _refined_reciprocal(det)
    h6 = (b0 * a11 - a01 * b1) * inv_det
    h7 = (a00 * b1 - b0 * a10) * inv_det

    # Back-substitution through the unit upper-triangular M factor, shared by
    # both half-systems (P -> h0..h2, Q -> h3..h5).
    h2 = aug[2][5] - aug[2][3] * h6 - aug[2][4] * h7
    h5 = aug[2][8] - aug[2][6] * h6 - aug[2][7] * h7
    h1 = aug[1][5] - aug[1][2] * h2 - aug[1][3] * h6 - aug[1][4] * h7
    h4 = aug[1][8] - aug[1][2] * h5 - aug[1][6] * h6 - aug[1][7] * h7
    h0 = aug[0][5] - aug[0][1] * h1 - aug[0][2] * h2 - aug[0][3] * h6 - aug[0][4] * h7
    h3 = aug[0][8] - aug[0][1] * h4 - aug[0][2] * h5 - aug[0][6] * h6 - aug[0][7] * h7

    return [h0, h1, h2, h3, h4, h5, h6, h7, jnp.ones_like(h0)]


def _dlt_kernel(ca_ref, hp_ref, out_ref):
    # ca_ref/hp_ref: (T, 8, 8, 128) f32 -- T batch tiles, 8 coordinate rows,
    #                batch mapped onto (sublane, lane).
    # out_ref:       (T, 9, 8, 128) f32 -- 9 homography entries per tile.
    t_tiles = ca_ref.shape[0]
    if t_tiles == 1:
        # Fully static path (used by small batches / the test below).
        hs = _solve_tile(ca_ref[0], hp_ref[0])
        for r in range(9):
            out_ref[0, r] = hs[r]
    else:
        # Sequential loop over the T tiles: amortizes per-grid-step overhead
        # without multiplying the live vreg set by T.
        def body(t, carry):
            hs = _solve_tile(ca_ref[t], hp_ref[t])
            out_ref[t] = jnp.stack(hs, axis=0)
            return carry

        jax.lax.fori_loop(0, t_tiles, body, 0)


def tensor_dlt(ca, h4pt):
    """Pallas TensorDLT: ca (B,8,1), h4pt (B,8,1) -> H (B,3,3)."""
    assert ca.shape == h4pt.shape and ca.shape[1:] == (8, 1)
    b = ca.shape[0]
    nb = max(1, -(-b // _BT))                 # number of 1024-system tiles

    # Tiles per grid step: amortize the ~0.35us step overhead for big batches
    # while keeping >= 2 grid steps when nb >= 2 (v7x megacore utilization).
    if nb <= 1:
        t_tiles = 1
    else:
        t_tiles = min(_MAX_TILES_PER_STEP, (nb + 1) // 2)
    ns = -(-nb // t_tiles)                    # grid steps
    nb_pad = ns * t_tiles
    b_pad = nb_pad * _BT

    # Padding lanes get a valid (nonsingular) unit square -> identity
    # homography, so no lane divides by zero.
    square = jnp.array([0., 0., 1., 0., 1., 1., 0., 1.], jnp.float32)

    def prep(a):
        a = a.reshape(b, 8).astype(jnp.float32)
        if b_pad != b:
            pad = jnp.broadcast_to(square, (b_pad - b, 8))
            a = jnp.concatenate([a, pad], axis=0)
        # (b_pad, 8) -> (nb_pad, sub, lane, coord) -> (nb_pad, coord, sub, lane)
        return a.reshape(nb_pad, _SUB, _LANE, 8).transpose(0, 3, 1, 2)

    ca_p = prep(ca)
    hp_p = prep(h4pt)

    out = pl.pallas_call(
        _dlt_kernel,
        out_shape=jax.ShapeDtypeStruct((nb_pad, 9, _SUB, _LANE), jnp.float32),
        grid=(ns,),
        in_specs=[
            pl.BlockSpec((t_tiles, 8, _SUB, _LANE), lambda i: (i, 0, 0, 0)),
            pl.BlockSpec((t_tiles, 8, _SUB, _LANE), lambda i: (i, 0, 0, 0)),
        ],
        out_specs=pl.BlockSpec((t_tiles, 9, _SUB, _LANE), lambda i: (i, 0, 0, 0)),
        compiler_params=pltpu.CompilerParams(
            dimension_semantics=("parallel",)),
    )(ca_p, hp_p)

    # (nb_pad, 9, sub, lane) -> (b_pad, 9) -> (B, 3, 3)
    h = out.transpose(0, 2, 3, 1).reshape(b_pad, 9)[:b].reshape(b, 3, 3)
    return h


def _reference(ca, h4pt):
    """Pure-JAX mirror of the PyTorch module (uses SVD-based pinv)."""
    bsz = ca.shape[0]
    x = ca[:, 0::2]
    y = ca[:, 1::2]
    xp = h4pt[:, 0::2]
    yp = h4pt[:, 1::2]
    z = jnp.zeros_like(x)
    o = jnp.ones_like(x)
    row1 = jnp.stack([z, z, z, -x, -y, -o, yp * x, yp * y], axis=2)
    row2 = jnp.stack([x, y, o, z, z, z, -xp * x, -xp * y], axis=2)
    a = jnp.stack([row1, row2], axis=2).reshape(bsz, 8, 8)
    b = jnp.stack([xp, yp], axis=2).reshape(bsz, 8, 1)
    h = jnp.linalg.pinv(a) @ b
    h = jnp.concatenate([h, jnp.ones_like(h[:, 0:1, :])], axis=1).reshape(bsz, 3, 3)
    return h


if __name__ == "__main__":
    key = jax.random.PRNGKey(0)
    k1, k2 = jax.random.split(key)
    batch = 2
    # Corners of a unit square (x0,y0,...,x3,y3) + small deterministic noise.
    base = jnp.array([0., 0., 1., 0., 1., 1., 0., 1.],
                     dtype=jnp.float32).reshape(1, 8, 1)
    ca = base + 0.05 * jax.random.normal(k1, (batch, 8, 1), jnp.float32)
    h4pt = base + 0.05 * jax.random.normal(k2, (batch, 8, 1), jnp.float32)

    h = tensor_dlt(ca, h4pt)
    h = jax.block_until_ready(h)

    ref = _reference(ca, h4pt)
    assert h.shape == (batch, 3, 3)
    assert jnp.allclose(h, ref, rtol=1e-3, atol=1e-3)
    print("KERNEL_OK")
</pallas_src>

<mosaic_0001>
module attributes {stable_mosaic.version = 11 : i64} {
  func.func @_dlt_kernel(%arg0: i32, %arg1: memref<1x8x8x128xf32, #tpu.memory_space<vmem>>, %arg2: memref<1x8x8x128xf32, #tpu.memory_space<vmem>>, %arg3: memref<1x9x8x128xf32, #tpu.memory_space<vmem>>) attributes {dimension_semantics = [#tpu.dimension_semantics<parallel>], iteration_bounds = array<i64: 1>, scalar_prefetch = 0 : i64, scratch_operands = 0 : i64, tpu.core_type = #tpu.core_type<tc>, window_params = [{transform_indices = @transform_0, window_bounds = array<i64: 1, 8, 8, 128>}, {transform_indices = @transform_1, window_bounds = array<i64: 1, 8, 8, 128>}, {transform_indices = @transform_2, window_bounds = array<i64: 1, 9, 8, 128>}]} {
    %c0 = arith.constant 0 : index
    %c0_0 = arith.constant 0 : index
    %c0_1 = arith.constant 0 : index
    %c0_2 = arith.constant 0 : index
    %0 = vector.load %arg1[%c0, %c0_0, %c0_1, %c0_2] : memref<1x8x8x128xf32, #tpu.memory_space<vmem>>, vector<1x8x8x128xf32>
    %1 = vector.shape_cast %0 : vector<1x8x8x128xf32> to vector<8x8x128xf32>
    %c0_3 = arith.constant 0 : index
    %c0_4 = arith.constant 0 : index
    %c0_5 = arith.constant 0 : index
    %c0_6 = arith.constant 0 : index
    %2 = vector.load %arg2[%c0_3, %c0_4, %c0_5, %c0_6] : memref<1x8x8x128xf32, #tpu.memory_space<vmem>>, vector<1x8x8x128xf32>
    %3 = vector.shape_cast %2 : vector<1x8x8x128xf32> to vector<8x8x128xf32>
    %4 = vector.extract_strided_slice %1 {offsets = [0, 0, 0], sizes = [1, 8, 128], strides = [1, 1, 1]} : vector<8x8x128xf32> to vector<1x8x128xf32>
    %5 = vector.shape_cast %4 : vector<1x8x128xf32> to vector<8x128xf32>
    %6 = vector.extract_strided_slice %1 {offsets = [2, 0, 0], sizes = [1, 8, 128], strides = [1, 1, 1]} : vector<8x8x128xf32> to vector<1x8x128xf32>
    %7 = vector.shape_cast %6 : vector<1x8x128xf32> to vector<8x128xf32>
    %8 = vector.extract_strided_slice %1 {offsets = [4, 0, 0], sizes = [1, 8, 128], strides = [1, 1, 1]} : vector<8x8x128xf32> to vector<1x8x128xf32>
    %9 = vector.shape_cast %8 : vector<1x8x128xf32> to vector<8x128xf32>
    %10 = vector.extract_strided_slice %1 {offsets = [6, 0, 0], sizes = [1, 8, 128], strides = [1, 1, 1]} : vector<8x8x128xf32> to vector<1x8x128xf32>
    %11 = vector.shape_cast %10 : vector<1x8x128xf32> to vector<8x128xf32>
    %12 = vector.extract_strided_slice %1 {offsets = [1, 0, 0], sizes = [1, 8, 128], strides = [1, 1, 1]} : vector<8x8x128xf32> to vector<1x8x128xf32>
    %13 = vector.shape_cast %12 : vector<1x8x128xf32> to vector<8x128xf32>
    %14 = vector.extract_strided_slice %1 {offsets = [3, 0, 0], sizes = [1, 8, 128], strides = [1, 1, 1]} : vector<8x8x128xf32> to vector<1x8x128xf32>
    %15 = vector.shape_cast %14 : vector<1x8x128xf32> to vector<8x128xf32>
    %16 = vector.extract_strided_slice %1 {offsets = [5, 0, 0], sizes = [1, 8, 128], strides = [1, 1, 1]} : vector<8x8x128xf32> to vector<1x8x128xf32>
    %17 = vector.shape_cast %16 : vector<1x8x128xf32> to vector<8x128xf32>
    %18 = vector.extract_strided_slice %1 {offsets = [7, 0, 0], sizes = [1, 8, 128], strides = [1, 1, 1]} : vector<8x8x128xf32> to vector<1x8x128xf32>
    %19 = vector.shape_cast %18 : vector<1x8x128xf32> to vector<8x128xf32>
    %20 = vector.extract_strided_slice %3 {offsets = [0, 0, 0], sizes = [1, 8, 128], strides = [1, 1, 1]} : vector<8x8x128xf32> to vector<1x8x128xf32>
    %21 = vector.shape_cast %20 : vector<1x8x128xf32> to vector<8x128xf32>
    %22 = vector.extract_strided_slice %3 {offsets = [2, 0, 0], sizes = [1, 8, 128], strides = [1, 1, 1]} : vector<8x8x128xf32> to vector<1x8x128xf32>
    %23 = vector.shape_cast %22 : vector<1x8x128xf32> to vector<8x128xf32>
    %24 = vector.extract_strided_slice %3 {offsets = [4, 0, 0], sizes = [1, 8, 128], strides = [1, 1, 1]} : vector<8x8x128xf32> to vector<1x8x128xf32>
    %25 = vector.shape_cast %24 : vector<1x8x128xf32> to vector<8x128xf32>
    %26 = vector.extract_strided_slice %3 {offsets = [6, 0, 0], sizes = [1, 8, 128], strides = [1, 1, 1]} : vector<8x8x128xf32> to vector<1x8x128xf32>
    %27 = vector.shape_cast %26 : vector<1x8x128xf32> to vector<8x128xf32>
    %28 = vector.extract_strided_slice %3 {offsets = [1, 0, 0], sizes = [1, 8, 128], strides = [1, 1, 1]} : vector<8x8x128xf32> to vector<1x8x128xf32>
    %29 = vector.shape_cast %28 : vector<1x8x128xf32> to vector<8x128xf32>
    %30 = vector.extract_strided_slice %3 {offsets = [3, 0, 0], sizes = [1, 8, 128], strides = [1, 1, 1]} : vector<8x8x128xf32> to vector<1x8x128xf32>
    %31 = vector.shape_cast %30 : vector<1x8x128xf32> to vector<8x128xf32>
    %32 = vector.extract_strided_slice %3 {offsets = [5, 0, 0], sizes = [1, 8, 128], strides = [1, 1, 1]} : vector<8x8x128xf32> to vector<1x8x128xf32>
    %33 = vector.shape_cast %32 : vector<1x8x128xf32> to vector<8x128xf32>
    %34 = vector.extract_strided_slice %3 {offsets = [7, 0, 0], sizes = [1, 8, 128], strides = [1, 1, 1]} : vector<8x8x128xf32> to vector<1x8x128xf32>
    %35 = vector.shape_cast %34 : vector<1x8x128xf32> to vector<8x128xf32>
    %cst = arith.constant 1.000000e+00 : f32
    %36 = vector.broadcast %cst : f32 to vector<8x128xf32>
    %cst_7 = arith.constant 0.000000e+00 : f32
    %37 = vector.broadcast %cst_7 : f32 to vector<8x128xf32>
    %38 = arith.subf %37, %21 : vector<8x128xf32>
    %cst_8 = arith.constant 0.000000e+00 : f32
    %39 = vector.broadcast %cst_8 : f32 to vector<8x128xf32>
    %40 = arith.subf %39, %29 : vector<8x128xf32>
    %41 = arith.mulf %38, %5 : vector<8x128xf32>
    %42 = arith.mulf %38, %13 : vector<8x128xf32>
    %43 = arith.mulf %40, %5 : vector<8x128xf32>
    %44 = arith.mulf %40, %13 : vector<8x128xf32>
    %cst_9 = arith.constant 0.000000e+00 : f32
    %45 = vector.broadcast %cst_9 : f32 to vector<8x128xf32>
    %46 = arith.subf %45, %23 : vector<8x128xf32>
    %cst_10 = arith.constant 0.000000e+00 : f32
    %47 = vector.broadcast %cst_10 : f32 to vector<8x128xf32>
    %48 = arith.subf %47, %31 : vector<8x128xf32>
    %49 = arith.mulf %46, %7 : vector<8x128xf32>
    %50 = arith.mulf %46, %15 : vector<8x128xf32>
    %51 = arith.mulf %48, %7 : vector<8x128xf32>
    %52 = arith.mulf %48, %15 : vector<8x128xf32>
    %cst_11 = arith.constant 0.000000e+00 : f32
    %53 = vector.broadcast %cst_11 : f32 to vector<8x128xf32>
    %54 = arith.subf %53, %25 : vector<8x128xf32>
    %cst_12 = arith.constant 0.000000e+00 : f32
    %55 = vector.broadcast %cst_12 : f32 to vector<8x128xf32>
    %56 = arith.subf %55, %33 : vector<8x128xf32>
    %57 = arith.mulf %54, %9 : vector<8x128xf32>
    %58 = arith.mulf %54, %17 : vector<8x128xf32>
    %59 = arith.mulf %56, %9 : vector<8x128xf32>
    %60 = arith.mulf %56, %17 : vector<8x128xf32>
    %cst_13 = arith.constant 0.000000e+00 : f32
    %61 = vector.broadcast %cst_13 : f32 to vector<8x128xf32>
    %62 = arith.subf %61, %27 : vector<8x128xf32>
    %cst_14 = arith.constant 0.000000e+00 : f32
    %63 = vector.broadcast %cst_14 : f32 to vector<8x128xf32>
    %64 = arith.subf %63, %35 : vector<8x128xf32>
    %65 = arith.mulf %62, %11 : vector<8x128xf32>
    %66 = arith.mulf %62, %19 : vector<8x128xf32>
    %67 = arith.mulf %64, %11 : vector<8x128xf32>
    %68 = arith.mulf %64, %19 : vector<8x128xf32>
    %69 = math.absf %5 : vector<8x128xf32>
    %70 = math.absf %7 : vector<8x128xf32>
    %71 = arith.cmpf ogt, %70, %69 : vector<8x128xf32>
    %72 = arith.select %71, %70, %69 : vector<8x128xi1>, vector<8x128xf32>
    %73 = arith.select %71, %7, %5 : vector<8x128xi1>, vector<8x128xf32>
    %74 = arith.select %71, %5, %7 : vector<8x128xi1>, vector<8x128xf32>
    %75 = arith.select %71, %15, %13 : vector<8x128xi1>, vector<8x128xf32>
    %76 = arith.select %71, %13, %15 : vector<8x128xi1>, vector<8x128xf32>
    %77 = arith.select %71, %36, %36 : vector<8x128xi1>, vector<8x128xf32>
    %78 = arith.select %71, %36, %36 : vector<8x128xi1>, vector<8x128xf32>
    %79 = arith.select %71, %49, %41 : vector<8x128xi1>, vector<8x128xf32>
    %80 = arith.select %71, %41, %49 : vector<8x128xi1>, vector<8x128xf32>
    %81 = arith.select %71, %50, %42 : vector<8x128xi1>, vector<8x128xf32>
    %82 = arith.select %71, %42, %50 : vector<8x128xi1>, vector<8x128xf32>
    %83 = arith.select %71, %31, %29 : vector<8x128xi1>, vector<8x128xf32>
    %84 = arith.select %71, %29, %31 : vector<8x128xi1>, vector<8x128xf32>
    %85 = arith.select %71, %51, %43 : vector<8x128xi1>, vector<8x128xf32>
    %86 = arith.select %71, %43, %51 : vector<8x128xi1>, vector<8x128xf32>
    %87 = arith.select %71, %52, %44 : vector<8x128xi1>, vector<8x128xf32>
    %88 = arith.select %71, %44, %52 : vector<8x128xi1>, vector<8x128xf32>
    %89 = arith.select %71, %46, %38 : vector<8x128xi1>, vector<8x128xf32>
    %90 = arith.select %71, %38, %46 : vector<8x128xi1>, vector<8x128xf32>
    %91 = math.absf %9 : vector<8x128xf32>
    %92 = arith.cmpf ogt, %91, %72 : vector<8x128xf32>
    %93 = arith.select %92, %91, %72 : vector<8x128xi1>, vector<8x128xf32>
    %94 = arith.select %92, %9, %73 : vector<8x128xi1>, vector<8x128xf32>
    %95 = arith.select %92, %73, %9 : vector<8x128xi1>, vector<8x128xf32>
    %96 = arith.select %92, %17, %75 : vector<8x128xi1>, vector<8x128xf32>
    %97 = arith.select %92, %75, %17 : vector<8x128xi1>, vector<8x128xf32>
    %98 = arith.select %92, %36, %77 : vector<8x128xi1>, vector<8x128xf32>
    %99 = arith.select %92, %77, %36 : vector<8x128xi1>, vector<8x128xf32>
    %100 = arith.select %92, %57, %79 : vector<8x128xi1>, vector<8x128xf32>
    %101 = arith.select %92, %79, %57 : vector<8x128xi1>, vector<8x128xf32>
    %102 = arith.select %92, %58, %81 : vector<8x128xi1>, vector<8x128xf32>
    %103 = arith.select %92, %81, %58 : vector<8x128xi1>, vector<8x128xf32>
    %104 = arith.select %92, %33, %83 : vector<8x128xi1>, vector<8x128xf32>
    %105 = arith.select %92, %83, %33 : vector<8x128xi1>, vector<8x128xf32>
    %106 = arith.select %92, %59, %85 : vector<8x128xi1>, vector<8x128xf32>
    %107 = arith.select %92, %85, %59 : vector<8x128xi1>, vector<8x128xf32>
    %108 = arith.select %92, %60, %87 : vector<8x128xi1>, vector<8x128xf32>
    %109 = arith.select %92, %87, %60 : vector<8x128xi1>, vector<8x128xf32>
    %110 = arith.select %92, %54, %89 : vector<8x128xi1>, vector<8x128xf32>
    %111 = arith.select %92, %89, %54 : vector<8x128xi1>, vector<8x128xf32>
    %112 = math.absf %11 : vector<8x128xf32>
    %113 = arith.cmpf ogt, %112, %93 : vector<8x128xf32>
    %114 = arith.select %113, %11, %94 : vector<8x128xi1>, vector<8x128xf32>
    %115 = arith.select %113, %94, %11 : vector<8x128xi1>, vector<8x128xf32>
    %116 = arith.select %113, %19, %96 : vector<8x128xi1>, vector<8x128xf32>
    %117 = arith.select %113, %96, %19 : vector<8x128xi1>, vector<8x128xf32>
    %118 = arith.select %113, %36, %98 : vector<8x128xi1>, vector<8x128xf32>
    %119 = arith.select %113, %98, %36 : vector<8x128xi1>, vector<8x128xf32>
    %120 = arith.select %113, %65, %100 : vector<8x128xi1>, vector<8x128xf32>
    %121 = arith.select %113, %100, %65 : vector<8x128xi1>, vector<8x128xf32>
    %122 = arith.select %113, %66, %102 : vector<8x128xi1>, vector<8x128xf32>
    %123 = arith.select %113, %102, %66 : vector<8x128xi1>, vector<8x128xf32>
    %124 = arith.select %113, %35, %104 : vector<8x128xi1>, vector<8x128xf32>
    %125 = arith.select %113, %104, %35 : vector<8x128xi1>, vector<8x128xf32>
    %126 = arith.select %113, %67, %106 : vector<8x128xi1>, vector<8x128xf32>
    %127 = arith.select %113, %106, %67 : vector<8x128xi1>, vector<8x128xf32>
    %128 = arith.select %113, %68, %108 : vector<8x128xi1>, vector<8x128xf32>
    %129 = arith.select %113, %108, %68 : vector<8x128xi1>, vector<8x128xf32>
    %130 = arith.select %113, %62, %110 : vector<8x128xi1>, vector<8x128xf32>
    %131 = arith.select %113, %110, %62 : vector<8x128xi1>, vector<8x128xf32>
    %132 = tpu.reciprocal %114 {approx = true} : vector<8x128xf32> -> vector<8x128xf32>
    %133 = arith.mulf %114, %132 : vector<8x128xf32>
    %cst_15 = arith.constant 2.000000e+00 : f32
    %134 = vector.broadcast %cst_15 : f32 to vector<8x128xf32>
    %135 = arith.subf %134, %133 : vector<8x128xf32>
    %136 = arith.mulf %132, %135 : vector<8x128xf32>
    %137 = arith.mulf %116, %136 : vector<8x128xf32>
    %138 = arith.mulf %118, %136 : vector<8x128xf32>
    %139 = arith.mulf %120, %136 : vector<8x128xf32>
    %140 = arith.mulf %122, %136 : vector<8x128xf32>
    %141 = arith.mulf %124, %136 : vector<8x128xf32>
    %142 = arith.mulf %126, %136 : vector<8x128xf32>
    %143 = arith.mulf %128, %136 : vector<8x128xf32>
    %144 = arith.mulf %130, %136 : vector<8x128xf32>
    %145 = arith.mulf %74, %137 : vector<8x128xf32>
    %146 = arith.subf %76, %145 : vector<8x128xf32>
    %147 = arith.mulf %74, %138 : vector<8x128xf32>
    %148 = arith.subf %78, %147 : vector<8x128xf32>
    %149 = arith.mulf %74, %139 : vector<8x128xf32>
    %150 = arith.subf %80, %149 : vector<8x128xf32>
    %151 = arith.mulf %74, %140 : vector<8x128xf32>
    %152 = arith.subf %82, %151 : vector<8x128xf32>
    %153 = arith.mulf %74, %141 : vector<8x128xf32>
    %154 = arith.subf %84, %153 : vector<8x128xf32>
    %155 = arith.mulf %74, %142 : vector<8x128xf32>
    %156 = arith.subf %86, %155 : vector<8x128xf32>
    %157 = arith.mulf %74, %143 : vector<8x128xf32>
    %158 = arith.subf %88, %157 : vector<8x128xf32>
    %159 = arith.mulf %74, %144 : vector<8x128xf32>
    %160 = arith.subf %90, %159 : vector<8x128xf32>
    %161 = arith.mulf %95, %137 : vector<8x128xf32>
    %162 = arith.subf %97, %161 : vector<8x128xf32>
    %163 = arith.mulf %95, %138 : vector<8x128xf32>
    %164 = arith.subf %99, %163 : vector<8x128xf32>
    %165 = arith.mulf %95, %139 : vector<8x128xf32>
    %166 = arith.subf %101, %165 : vector<8x128xf32>
    %167 = arith.mulf %95, %140 : vector<8x128xf32>
    %168 = arith.subf %103, %167 : vector<8x128xf32>
    %169 = arith.mulf %95, %141 : vector<8x128xf32>
    %170 = arith.subf %105, %169 : vector<8x128xf32>
    %171 = arith.mulf %95, %142 : vector<8x128xf32>
    %172 = arith.subf %107, %171 : vector<8x128xf32>
    %173 = arith.mulf %95, %143 : vector<8x128xf32>
    %174 = arith.subf %109, %173 : vector<8x128xf32>
    %175 = arith.mulf %95, %144 : vector<8x128xf32>
    %176 = arith.subf %111, %175 : vector<8x128xf32>
    %177 = arith.mulf %115, %137 : vector<8x128xf32>
    %178 = arith.subf %117, %177 : vector<8x128xf32>
    %179 = arith.mulf %115, %138 : vector<8x128xf32>
    %180 = arith.subf %119, %179 : vector<8x128xf32>
    %181 = arith.mulf %115, %139 : vector<8x128xf32>
    %182 = arith.subf %121, %181 : vector<8x128xf32>
    %183 = arith.mulf %115, %140 : vector<8x128xf32>
    %184 = arith.subf %123, %183 : vector<8x128xf32>
    %185 = arith.mulf %115, %141 : vector<8x128xf32>
    %186 = arith.subf %125, %185 : vector<8x128xf32>
    %187 = arith.mulf %115, %142 : vector<8x128xf32>
    %188 = arith.subf %127, %187 : vector<8x128xf32>
    %189 = arith.mulf %115, %143 : vector<8x128xf32>
    %190 = arith.subf %129, %189 : vector<8x128xf32>
    %191 = arith.mulf %115, %144 : vector<8x128xf32>
    %192 = arith.subf %131, %191 : vector<8x128xf32>
    %193 = math.absf %146 : vector<8x128xf32>
    %194 = math.absf %162 : vector<8x128xf32>
    %195 = arith.cmpf ogt, %194, %193 : vector<8x128xf32>
    %196 = arith.select %195, %194, %193 : vector<8x128xi1>, vector<8x128xf32>
    %197 = arith.select %195, %162, %146 : vector<8x128xi1>, vector<8x128xf32>
    %198 = arith.select %195, %146, %162 : vector<8x128xi1>, vector<8x128xf32>
    %199 = arith.select %195, %164, %148 : vector<8x128xi1>, vector<8x128xf32>
    %200 = arith.select %195, %148, %164 : vector<8x128xi1>, vector<8x128xf32>
    %201 = arith.select %195, %166, %150 : vector<8x128xi1>, vector<8x128xf32>
    %202 = arith.select %195, %150, %166 : vector<8x128xi1>, vector<8x128xf32>
    %203 = arith.select %195, %168, %152 : vector<8x128xi1>, vector<8x128xf32>
    %204 = arith.select %195, %152, %168 : vector<8x128xi1>, vector<8x128xf32>
    %205 = arith.select %195, %170, %154 : vector<8x128xi1>, vector<8x128xf32>
    %206 = arith.select %195, %154, %170 : vector<8x128xi1>, vector<8x128xf32>
    %207 = arith.select %195, %172, %156 : vector<8x128xi1>, vector<8x128xf32>
    %208 = arith.select %195, %156, %172 : vector<8x128xi1>, vector<8x128xf32>
    %209 = arith.select %195, %174, %158 : vector<8x128xi1>, vector<8x128xf32>
    %210 = arith.select %195, %158, %174 : vector<8x128xi1>, vector<8x128xf32>
    %211 = arith.select %195, %176, %160 : vector<8x128xi1>, vector<8x128xf32>
    %212 = arith.select %195, %160, %176 : vector<8x128xi1>, vector<8x128xf32>
    %213 = math.absf %178 : vector<8x128xf32>
    %214 = arith.cmpf ogt, %213, %196 : vector<8x128xf32>
    %215 = arith.select %214, %178, %197 : vector<8x128xi1>, vector<8x128xf32>
    %216 = arith.select %214, %197, %178 : vector<8x128xi1>, vector<8x128xf32>
    %217 = arith.select %214, %180, %199 : vector<8x128xi1>, vector<8x128xf32>
    %218 = arith.select %214, %199, %180 : vector<8x128xi1>, vector<8x128xf32>
    %219 = arith.select %214, %182, %201 : vector<8x128xi1>, vector<8x128xf32>
    %220 = arith.select %214, %201, %182 : vector<8x128xi1>, vector<8x128xf32>
    %221 = arith.select %214, %184, %203 : vector<8x128xi1>, vector<8x128xf32>
    %222 = arith.select %214, %203, %184 : vector<8x128xi1>, vector<8x128xf32>
    %223 = arith.select %214, %186, %205 : vector<8x128xi1>, vector<8x128xf32>
    %224 = arith.select %214, %205, %186 : vector<8x128xi1>, vector<8x128xf32>
    %225 = arith.select %214, %188, %207 : vector<8x128xi1>, vector<8x128xf32>
    %226 = arith.select %214, %207, %188 : vector<8x128xi1>, vector<8x128xf32>
    %227 = arith.select %214, %190, %209 : vector<8x128xi1>, vector<8x128xf32>
    %228 = arith.select %214, %209, %190 : vector<8x128xi1>, vector<8x128xf32>
    %229 = arith.select %214, %192, %211 : vector<8x128xi1>, vector<8x128xf32>
    %230 = arith.select %214, %211, %192 : vector<8x128xi1>, vector<8x128xf32>
    %231 = tpu.reciprocal %215 {approx = true} : vector<8x128xf32> -> vector<8x128xf32>
    %232 = arith.mulf %215, %231 : vector<8x128xf32>
    %cst_16 = arith.constant 2.000000e+00 : f32
    %233 = vector.broadcast %cst_16 : f32 to vector<8x128xf32>
    %234 = arith.subf %233, %232 : vector<8x128xf32>
    %235 = arith.mulf %231, %234 : vector<8x128xf32>
    %236 = arith.mulf %217, %235 : vector<8x128xf32>
    %237 = arith.mulf %219, %235 : vector<8x128xf32>
    %238 = arith.mulf %221, %235 : vector<8x128xf32>
    %239 = arith.mulf %223, %235 : vector<8x128xf32>
    %240 = arith.mulf %225, %235 : vector<8x128xf32>
    %241 = arith.mulf %227, %235 : vector<8x128xf32>
    %242 = arith.mulf %229, %235 : vector<8x128xf32>
    %243 = arith.mulf %198, %236 : vector<8x128xf32>
    %244 = arith.subf %200, %243 : vector<8x128xf32>
    %245 = arith.mulf %198, %237 : vector<8x128xf32>
    %246 = arith.subf %202, %245 : vector<8x128xf32>
    %247 = arith.mulf %198, %238 : vector<8x128xf32>
    %248 = arith.subf %204, %247 : vector<8x128xf32>
    %249 = arith.mulf %198, %239 : vector<8x128xf32>
    %250 = arith.subf %206, %249 : vector<8x128xf32>
    %251 = arith.mulf %198, %240 : vector<8x128xf32>
    %252 = arith.subf %208, %251 : vector<8x128xf32>
    %253 = arith.mulf %198, %241 : vector<8x128xf32>
    %254 = arith.subf %210, %253 : vector<8x128xf32>
    %255 = arith.mulf %198, %242 : vector<8x128xf32>
    %256 = arith.subf %212, %255 : vector<8x128xf32>
    %257 = arith.mulf %216, %236 : vector<8x128xf32>
    %258 = arith.subf %218, %257 : vector<8x128xf32>
    %259 = arith.mulf %216, %237 : vector<8x128xf32>
    %260 = arith.subf %220, %259 : vector<8x128xf32>
    %261 = arith.mulf %216, %238 : vector<8x128xf32>
    %262 = arith.subf %222, %261 : vector<8x128xf32>
    %263 = arith.mulf %216, %239 : vector<8x128xf32>
    %264 = arith.subf %224, %263 : vector<8x128xf32>
    %265 = arith.mulf %216, %240 : vector<8x128xf32>
    %266 = arith.subf %226, %265 : vector<8x128xf32>
    %267 = arith.mulf %216, %241 : vector<8x128xf32>
    %268 = arith.subf %228, %267 : vector<8x128xf32>
    %269 = arith.mulf %216, %242 : vector<8x128xf32>
    %270 = arith.subf %230, %269 : vector<8x128xf32>
    %271 = math.absf %244 : vector<8x128xf32>
    %272 = math.absf %258 : vector<8x128xf32>
    %273 = arith.cmpf ogt, %272, %271 : vector<8x128xf32>
    %274 = arith.select %273, %258, %244 : vector<8x128xi1>, vector<8x128xf32>
    %275 = arith.select %273, %244, %258 : vector<8x128xi1>, vector<8x128xf32>
    %276 = arith.select %273, %260, %246 : vector<8x128xi1>, vector<8x128xf32>
    %277 = arith.select %273, %246, %260 : vector<8x128xi1>, vector<8x128xf32>
    %278 = arith.select %273, %262, %248 : vector<8x128xi1>, vector<8x128xf32>
    %279 = arith.select %273, %248, %262 : vector<8x128xi1>, vector<8x128xf32>
    %280 = arith.select %273, %264, %250 : vector<8x128xi1>, vector<8x128xf32>
    %281 = arith.select %273, %250, %264 : vector<8x128xi1>, vector<8x128xf32>
    %282 = arith.select %273, %266, %252 : vector<8x128xi1>, vector<8x128xf32>
    %283 = arith.select %273, %252, %266 : vector<8x128xi1>, vector<8x128xf32>
    %284 = arith.select %273, %268, %254 : vector<8x128xi1>, vector<8x128xf32>
    %285 = arith.select %273, %254, %268 : vector<8x128xi1>, vector<8x128xf32>
    %286 = arith.select %273, %270, %256 : vector<8x128xi1>, vector<8x128xf32>
    %287 = arith.select %273, %256, %270 : vector<8x128xi1>, vector<8x128xf32>
    %288 = tpu.reciprocal %274 {approx = true} : vector<8x128xf32> -> vector<8x128xf32>
    %289 = arith.mulf %274, %288 : vector<8x128xf32>
    %cst_17 = arith.constant 2.000000e+00 : f32
    %290 = vector.broadcast %cst_17 : f32 to vector<8x128xf32>
    %291 = arith.subf %290, %289 : vector<8x128xf32>
    %292 = arith.mulf %288, %291 : vector<8x128xf32>
    %293 = arith.mulf %276, %292 : vector<8x128xf32>
    %294 = arith.mulf %278, %292 : vector<8x128xf32>
    %295 = arith.mulf %280, %292 : vector<8x128xf32>
    %296 = arith.mulf %282, %292 : vector<8x128xf32>
    %297 = arith.mulf %284, %292 : vector<8x128xf32>
    %298 = arith.mulf %286, %292 : vector<8x128xf32>
    %299 = arith.mulf %275, %293 : vector<8x128xf32>
    %300 = arith.subf %277, %299 : vector<8x128xf32>
    %301 = arith.mulf %275, %294 : vector<8x128xf32>
    %302 = arith.subf %279, %301 : vector<8x128xf32>
    %303 = arith.mulf %275, %295 : vector<8x128xf32>
    %304 = arith.subf %281, %303 : vector<8x128xf32>
    %305 = arith.mulf %275, %296 : vector<8x128xf32>
    %306 = arith.subf %283, %305 : vector<8x128xf32>
    %307 = arith.mulf %275, %297 : vector<8x128xf32>
    %308 = arith.subf %285, %307 : vector<8x128xf32>
    %309 = arith.mulf %275, %298 : vector<8x128xf32>
    %310 = arith.subf %287, %309 : vector<8x128xf32>
    %311 = arith.mulf %300, %308 : vector<8x128xf32>
    %312 = arith.mulf %302, %306 : vector<8x128xf32>
    %313 = arith.subf %311, %312 : vector<8x128xf32>
    %314 = tpu.reciprocal %313 {approx = true} : vector<8x128xf32> -> vector<8x128xf32>
    %315 = arith.mulf %313, %314 : vector<8x128xf32>
    %cst_18 = arith.constant 2.000000e+00 : f32
    %316 = vector.broadcast %cst_18 : f32 to vector<8x128xf32>
    %317 = arith.subf %316, %315 : vector<8x128xf32>
    %318 = arith.mulf %314, %317 : vector<8x128xf32>
    %319 = arith.mulf %304, %308 : vector<8x128xf32>
    %320 = arith.mulf %302, %310 : vector<8x128xf32>
    %321 = arith.subf %319, %320 : vector<8x128xf32>
    %322 = arith.mulf %321, %318 : vector<8x128xf32>
    %323 = arith.mulf %300, %310 : vector<8x128xf32>
    %324 = arith.mulf %304, %306 : vector<8x128xf32>
    %325 = arith.subf %323, %324 : vector<8x128xf32>
    %326 = arith.mulf %325, %318 : vector<8x128xf32>
    %327 = arith.mulf %293, %322 : vector<8x128xf32>
    %328 = arith.subf %295, %327 : vector<8x128xf32>
    %329 = arith.mulf %294, %326 : vector<8x128xf32>
    %330 = arith.subf %328, %329 : vector<8x128xf32>
    %331 = arith.mulf %296, %322 : vector<8x128xf32>
    %332 = arith.subf %298, %331 : vector<8x128xf32>
    %333 = arith.mulf %297, %326 : vector<8x128xf32>
    %334 = arith.subf %332, %333 : vector<8x128xf32>
    %335 = arith.mulf %236, %330 : vector<8x128xf32>
    %336 = arith.subf %239, %335 : vector<8x128xf32>
    %337 = arith.mulf %237, %322 : vector<8x128xf32>
    %338 = arith.subf %336, %337 : vector<8x128xf32>
    %339 = arith.mulf %238, %326 : vector<8x128xf32>
    %340 = arith.subf %338, %339 : vector<8x128xf32>
    %341 = arith.mulf %236, %334 : vector<8x128xf32>
    %342 = arith.subf %242, %341 : vector<8x128xf32>
    %343 = arith.mulf %240, %322 : vector<8x128xf32>
    %344 = arith.subf %342, %343 : vector<8x128xf32>
    %345 = arith.mulf %241, %326 : vector<8x128xf32>
    %346 = arith.subf %344, %345 : vector<8x128xf32>
    %347 = arith.mulf %137, %340 : vector<8x128xf32>
    %348 = arith.subf %141, %347 : vector<8x128xf32>
    %349 = arith.mulf %138, %330 : vector<8x128xf32>
    %350 = arith.subf %348, %349 : vector<8x128xf32>
    %351 = arith.mulf %139, %322 : vector<8x128xf32>
    %352 = arith.subf %350, %351 : vector<8x128xf32>
    %353 = arith.mulf %140, %326 : vector<8x128xf32>
    %354 = arith.subf %352, %353 : vector<8x128xf32>
    %355 = arith.mulf %137, %346 : vector<8x128xf32>
    %356 = arith.subf %144, %355 : vector<8x128xf32>
    %357 = arith.mulf %138, %334 : vector<8x128xf32>
    %358 = arith.subf %356, %357 : vector<8x128xf32>
    %359 = arith.mulf %142, %322 : vector<8x128xf32>
    %360 = arith.subf %358, %359 : vector<8x128xf32>
    %361 = arith.mulf %143, %326 : vector<8x128xf32>
    %362 = arith.subf %360, %361 : vector<8x128xf32>
    %cst_19 = arith.constant 1.000000e+00 : f32
    %363 = vector.broadcast %cst_19 : f32 to vector<8x128xf32>
    %c0_20 = arith.constant 0 : index
    %c0_21 = arith.constant 0 : index
    %c0_22 = arith.constant 0 : index
    %c0_23 = arith.constant 0 : index
    %364 = vector.load %arg3[%c0_20, %c0_21, %c0_22, %c0_23] : memref<1x9x8x128xf32, #tpu.memory_space<vmem>>, vector<1x1x8x128xf32>
    %365 = vector.shape_cast %364 : vector<1x1x8x128xf32> to vector<8x128xf32>
    %366 = vector.shape_cast %354 : vector<8x128xf32> to vector<1x1x8x128xf32>
    tpu.vector_store %arg3[%c0_20, %c0_21, %c0_22, %c0_23], %366 {strides = array<i32>} : memref<1x9x8x128xf32, #tpu.memory_space<vmem>>, vector<1x1x8x128xf32>,
    %c0_24 = arith.constant 0 : index
    %c1 = arith.constant 1 : index
    %c0_25 = arith.constant 0 : index
    %c0_26 = arith.constant 0 : index
    %367 = vector.load %arg3[%c0_24, %c1, %c0_25, %c0_26] : memref<1x9x8x128xf32, #tpu.memory_space<vmem>>, vector<1x1x8x128xf32>
    %368 = vector.shape_cast %367 : vector<1x1x8x128xf32> to vector<8x128xf32>
    %369 = vector.shape_cast %340 : vector<8x128xf32> to vector<1x1x8x128xf32>
    tpu.vector_store %arg3[%c0_24, %c1, %c0_25, %c0_26], %369 {strides = array<i32>} : memref<1x9x8x128xf32, #tpu.memory_space<vmem>>, vector<1x1x8x128xf32>,
    %c0_27 = arith.constant 0 : index
    %c2 = arith.constant 2 : index
    %c0_28 = arith.constant 0 : index
    %c0_29 = arith.constant 0 : index
    %370 = vector.load %arg3[%c0_27, %c2, %c0_28, %c0_29] : memref<1x9x8x128xf32, #tpu.memory_space<vmem>>, vector<1x1x8x128xf32>
    %371 = vector.shape_cast %370 : vector<1x1x8x128xf32> to vector<8x128xf32>
    %372 = vector.shape_cast %330 : vector<8x128xf32> to vector<1x1x8x128xf32>
    tpu.vector_store %arg3[%c0_27, %c2, %c0_28, %c0_29], %372 {strides = array<i32>} : memref<1x9x8x128xf32, #tpu.memory_space<vmem>>, vector<1x1x8x128xf32>,
    %c0_30 = arith.constant 0 : index
    %c3 = arith.constant 3 : index
    %c0_31 = arith.constant 0 : index
    %c0_32 = arith.constant 0 : index
    %373 = vector.load %arg3[%c0_30, %c3, %c0_31, %c0_32] : memref<1x9x8x128xf32, #tpu.memory_space<vmem>>, vector<1x1x8x128xf32>
    %374 = vector.shape_cast %373 : vector<1x1x8x128xf32> to vector<8x128xf32>
    %375 = vector.shape_cast %362 : vector<8x128xf32> to vector<1x1x8x128xf32>
    tpu.vector_store %arg3[%c0_30, %c3, %c0_31, %c0_32], %375 {strides = array<i32>} : memref<1x9x8x128xf32, #tpu.memory_space<vmem>>, vector<1x1x8x128xf32>,
    %c0_33 = arith.constant 0 : index
    %c4 = arith.constant 4 : index
    %c0_34 = arith.constant 0 : index
    %c0_35 = arith.constant 0 : index
    %376 = vector.load %arg3[%c0_33, %c4, %c0_34, %c0_35] : memref<1x9x8x128xf32, #tpu.memory_space<vmem>>, vector<1x1x8x128xf32>
    %377 = vector.shape_cast %376 : vector<1x1x8x128xf32> to vector<8x128xf32>
    %378 = vector.shape_cast %346 : vector<8x128xf32> to vector<1x1x8x128xf32>
    tpu.vector_store %arg3[%c0_33, %c4, %c0_34, %c0_35], %378 {strides = array<i32>} : memref<1x9x8x128xf32, #tpu.memory_space<vmem>>, vector<1x1x8x128xf32>,
    %c0_36 = arith.constant 0 : index
    %c5 = arith.constant 5 : index
    %c0_37 = arith.constant 0 : index
    %c0_38 = arith.constant 0 : index
    %379 = vector.load %arg3[%c0_36, %c5, %c0_37, %c0_38] : memref<1x9x8x128xf32, #tpu.memory_space<vmem>>, vector<1x1x8x128xf32>
    %380 = vector.shape_cast %379 : vector<1x1x8x128xf32> to vector<8x128xf32>
    %381 = vector.shape_cast %334 : vector<8x128xf32> to vector<1x1x8x128xf32>
    tpu.vector_store %arg3[%c0_36, %c5, %c0_37, %c0_38], %381 {strides = array<i32>} : memref<1x9x8x128xf32, #tpu.memory_space<vmem>>, vector<1x1x8x128xf32>,
    %c0_39 = arith.constant 0 : index
    %c6 = arith.constant 6 : index
    %c0_40 = arith.constant 0 : index
    %c0_41 = arith.constant 0 : index
    %382 = vector.load %arg3[%c0_39, %c6, %c0_40, %c0_41] : memref<1x9x8x128xf32, #tpu.memory_space<vmem>>, vector<1x1x8x128xf32>
    %383 = vector.shape_cast %382 : vector<1x1x8x128xf32> to vector<8x128xf32>
    %384 = vector.shape_cast %322 : vector<8x128xf32> to vector<1x1x8x128xf32>
    tpu.vector_store %arg3[%c0_39, %c6, %c0_40, %c0_41], %384 {strides = array<i32>} : memref<1x9x8x128xf32, #tpu.memory_space<vmem>>, vector<1x1x8x128xf32>,
    %c0_42 = arith.constant 0 : index
    %c7 = arith.constant 7 : index
    %c0_43 = arith.constant 0 : index
    %c0_44 = arith.constant 0 : index
    %385 = vector.load %arg3[%c0_42, %c7, %c0_43, %c0_44] : memref<1x9x8x128xf32, #tpu.memory_space<vmem>>, vector<1x1x8x128xf32>
    %386 = vector.shape_cast %385 : vector<1x1x8x128xf32> to vector<8x128xf32>
    %387 = vector.shape_cast %326 : vector<8x128xf32> to vector<1x1x8x128xf32>
    tpu.vector_store %arg3[%c0_42, %c7, %c0_43, %c0_44], %387 {strides = array<i32>} : memref<1x9x8x128xf32, #tpu.memory_space<vmem>>, vector<1x1x8x128xf32>,
    %c0_45 = arith.constant 0 : index
    %c8 = arith.constant 8 : index
    %c0_46 = arith.constant 0 : index
    %c0_47 = arith.constant 0 : index
    %388 = vector.load %arg3[%c0_45, %c8, %c0_46, %c0_47] : memref<1x9x8x128xf32, #tpu.memory_space<vmem>>, vector<1x1x8x128xf32>
    %389 = vector.shape_cast %388 : vector<1x1x8x128xf32> to vector<8x128xf32>
    %390 = vector.shape_cast %363 : vector<8x128xf32> to vector<1x1x8x128xf32>
    tpu.vector_store %arg3[%c0_45, %c8, %c0_46, %c0_47], %390 {strides = array<i32>} : memref<1x9x8x128xf32, #tpu.memory_space<vmem>>, vector<1x1x8x128xf32>,
    return
  }
  func.func @transform_0(%arg0: i32) -> (i32, i32, i32, i32) {
    %c0_i32 = arith.constant 0 : i32
    %c0_i32_0 = arith.constant 0 : i32
    %c0_i32_1 = arith.constant 0 : i32
    %c0_i32_2 = arith.constant 0 : i32
    return %arg0, %c0_i32, %c0_i32_0, %c0_i32_1 : i32, i32, i32, i32
  }
  func.func @transform_1(%arg0: i32) -> (i32, i32, i32, i32) {
    %c0_i32 = arith.constant 0 : i32
    %c0_i32_0 = arith.constant 0 : i32
    %c0_i32_1 = arith.constant 0 : i32
    %c0_i32_2 = arith.constant 0 : i32
    return %arg0, %c0_i32, %c0_i32_0, %c0_i32_1 : i32, i32, i32, i32
  }
  func.func @transform_2(%arg0: i32) -> (i32, i32, i32, i32) {
    %c0_i32 = arith.constant 0 : i32
    %c0_i32_0 = arith.constant 0 : i32
    %c0_i32_1 = arith.constant 0 : i32
    %c0_i32_2 = arith.constant 0 : i32
    return %arg0, %c0_i32, %c0_i32_0, %c0_i32_1 : i32, i32, i32, i32
  }
}

</mosaic_0001>

<llo_original>
// kernel: tpu_custom_call.1
$region0: #{tpu_custom_call.1}
  #allocation0 [shape = 'u32[]', space=smem, size = 0x4, offset = 0x4, fixed_abs, tag = 'smem constant byte address 0x4 - core index']
  #allocation1 [shape = 'u32[144,128]{1,0:T(1,128)}', space=vmem, size = 0x12000, scoped, tag = 'internal scratch']
  %s0 = inlined_call_operand.hbm [shape: f32[1,8,8,128], index: 0, kind: input, shape index: {}]
  %s1 = inlined_call_operand.hbm [shape: f32[1,8,8,128], index: 1, kind: input, shape index: {}]
  %s2 = inlined_call_operand.hbm [shape: f32[1,9,8,128], index: 2, kind: output, shape index: {}]
  %s3 = sld [smem:[#allocation0]]
  $region26: #{tpu_custom_call.1} parent=0
    _
  %s5 = ssub.s32 1, %s3
  %s6 = scalar_select 0, %s5, %s3
  $region1: #{tpu_custom_call.1} parent=0
    #allocation2 [shape = 'u8[32768]{0}', space=vmem, size = 0x8000, scoped, tag = 'input window, operand 0, single buffered']
    #allocation3 [shape = 's32[1]{0}', space=sflag, size = 0x4, scoped, tag = 'scoped memory for tpu_custom_call.1']
    #allocation4 [shape = 's32[1]{0}', space=sflag, size = 0x4, scoped, tag = 'scoped memory for tpu_custom_call.1']
    #allocation5 [shape = 'u8[32768]{0}', space=vmem, size = 0x8000, scoped, tag = 'input window, operand 1, single buffered']
    #allocation6 [shape = 's32[1]{0}', space=sflag, size = 0x4, scoped, tag = 'scoped memory for tpu_custom_call.1']
    #allocation7 [shape = 'u8[36864]{0}', space=vmem, size = 0x9000, scoped, tag = 'output window, operand 0, single buffered']
    %7 = vsyncpa [#allocation3], 0
    %8 = vsyncpa [#allocation6], 0
    %9 = vsyncpa [#allocation4], 0
    // Predicated region
    $region2: #{tpu_custom_call.1} parent=1 // pred_check
      _
    $region3: #{tpu_custom_call.1} parent=1 // pred_check_branch
      %11 = sbr.rel (0) target = $region5
    $region4: #{tpu_custom_call.1} parent=1 // pred_region
      %s13 = ssub.s32 1024, 1024
      %14 = vsyncadd [#allocation3], %s13
      %s15 = sshll.u32 [#allocation2], 4
      %s16 = int_to_ptr.vmem [resolvable:$true] %s15
      %21 = dma.hbm_to_vmem [thread:$0]  %s0, 1024, %s16, [#allocation3], 128, 128, 8
    $region5: #{tpu_custom_call.1} parent=1 // pred_fallthru
      _
    // Predicated region
    $region6: #{tpu_custom_call.1} parent=1 // pred_check
      _
    $region7: #{tpu_custom_call.1} parent=1 // pred_check_branch
      %23 = sbr.rel (0) target = $region9
    $region8: #{tpu_custom_call.1} parent=1 // pred_region
      %s25 = ssub.s32 1024, 1024
      %26 = vsyncadd [#allocation6], %s25
      %s27 = sshll.u32 [#allocation5], 4
      %s28 = int_to_ptr.vmem [resolvable:$true] %s27
      %33 = dma.hbm_to_vmem [thread:$0]  %s1, 1024, %s28, [#allocation6], 128, 128, 8
    $region9: #{tpu_custom_call.1} parent=1 // pred_fallthru
      _
    // Predicated region
    $region10: #{tpu_custom_call.1} parent=1 // pred_check
      _
    $region11: #{tpu_custom_call.1} parent=1 // pred_check_branch
      %35 = sbr.rel (0) target = $region13
    $region12: #{tpu_custom_call.1} parent=1 // pred_region
      %36 = dma.done [#allocation3], 1024
    $region13: #{tpu_custom_call.1} parent=1 // pred_fallthru
      _
    // Predicated region
    $region14: #{tpu_custom_call.1} parent=1 // pred_check
      _
    $region15: #{tpu_custom_call.1} parent=1 // pred_check_branch
      %38 = sbr.rel (0) target = $region17
    $region16: #{tpu_custom_call.1} parent=1 // pred_region
      %39 = dma.done [#allocation6], 1024
    $region17: #{tpu_custom_call.1} parent=1 // pred_fallthru
      _
    %v40 = vld [vmem:[#allocation2] sm:$0xff]
    %v41 = vld [vmem:[#allocation2 + $0x8] sm:$0xff]
    %v42 = vld [vmem:[#allocation2 + $0x10] sm:$0xff]
    %v43 = vld [vmem:[#allocation2 + $0x18] sm:$0xff]
    %v44 = vld [vmem:[#allocation2 + $0x20] sm:$0xff]
    %v45 = vld [vmem:[#allocation2 + $0x28] sm:$0xff]
    %v46 = vld [vmem:[#allocation2 + $0x30] sm:$0xff]
    %v47 = vld [vmem:[#allocation2 + $0x38] sm:$0xff]
    %v48 = vld [vmem:[#allocation5] sm:$0xff]
    %v49 = vld [vmem:[#allocation5 + $0x8] sm:$0xff]
    %v50 = vld [vmem:[#allocation5 + $0x10] sm:$0xff]
    %v51 = vld [vmem:[#allocation5 + $0x18] sm:$0xff]
    %v52 = vld [vmem:[#allocation5 + $0x20] sm:$0xff]
    %v53 = vld [vmem:[#allocation5 + $0x28] sm:$0xff]
    %v54 = vld [vmem:[#allocation5 + $0x30] sm:$0xff]
    %v55 = vld [vmem:[#allocation5 + $0x38] sm:$0xff]
    %v56 = vsub.f32 0.0, %v48
    %v57 = vsub.f32 0.0, %v49
    %v58 = vmul.f32 %v56, %v40
    %v59 = vmul.f32 %v56, %v41
    %v60 = vmul.f32 %v57, %v40
    %v61 = vmul.f32 %v57, %v41
    %v62 = vsub.f32 0.0, %v50
    %v63 = vsub.f32 0.0, %v51
    %v64 = vmul.f32 %v62, %v42
    %v65 = vmul.f32 %v62, %v43
    %v66 = vmul.f32 %v63, %v42
    %v67 = vmul.f32 %v63, %v43
    %v68 = vsub.f32 0.0, %v52
    %v69 = vsub.f32 0.0, %v53
    %v70 = vmul.f32 %v68, %v44
    %v71 = vmul.f32 %v68, %v45
    %v72 = vmul.f32 %v69, %v44
    %v73 = vmul.f32 %v69, %v45
    %v74 = vsub.f32 0.0, %v54
    %v75 = vsub.f32 0.0, %v55
    %v76 = vmul.f32 %v74, %v46
    %v77 = vmul.f32 %v74, %v47
    %v78 = vmul.f32 %v75, %v46
    %v79 = vmul.f32 %v75, %v47
    %v80 = vand.u32 2147483647, %v40
    %v81 = vand.u32 2147483647, %v42
    %vm82 = vcmp.gt.f32.partialorder %v81, %v80
    %v83 = vsel %vm82, %v81, %v80
    %v84 = vsel %vm82, %v42, %v40
    %v85 = vsel %vm82, %v40, %v42
    %v86 = vsel %vm82, %v43, %v41
    %v87 = vsel %vm82, %v41, %v43
    %v88 = vsel %vm82, %v64, %v58
    %v89 = vsel %vm82, %v58, %v64
    %v90 = vsel %vm82, %v65, %v59
    %v91 = vsel %vm82, %v59, %v65
    %v92 = vsel %vm82, %v51, %v49
    %v93 = vsel %vm82, %v49, %v51
    %v94 = vsel %vm82, %v66, %v60
    %v95 = vsel %vm82, %v60, %v66
    %v96 = vsel %vm82, %v67, %v61
    %v97 = vsel %vm82, %v61, %v67
    %v98 = vsel %vm82, %v62, %v56
    %v99 = vsel %vm82, %v56, %v62
    %v100 = vand.u32 2147483647, %v44
    %vm101 = vcmp.gt.f32.partialorder %v100, %v83
    %v102 = vsel %vm101, %v100, %v83
    %v103 = vsel %vm101, %v44, %v84
    %v104 = vsel %vm101, %v84, %v44
    %v105 = vsel %vm101, %v45, %v86
    %v106 = vsel %vm101, %v86, %v45
    %v107 = vsel %vm101, %v70, %v88
    %v108 = vsel %vm101, %v88, %v70
    %v109 = vsel %vm101, %v71, %v90
    %v110 = vsel %vm101, %v90, %v71
    %v111 = vsel %vm101, %v53, %v92
    %v112 = vsel %vm101, %v92, %v53
    %v113 = vsel %vm101, %v72, %v94
    %v114 = vsel %vm101, %v94, %v72
    %v115 = vsel %vm101, %v73, %v96
    %v116 = vsel %vm101, %v96, %v73
    %v117 = vsel %vm101, %v68, %v98
    %v118 = vsel %vm101, %v98, %v68
    %v119 = vand.u32 2147483647, %v46
    %vm120 = vcmp.gt.f32.partialorder %v119, %v102
    %v121 = vsel %vm120, %v46, %v103
    %v122 = vsel %vm120, %v103, %v46
    %v123 = vsel %vm120, %v47, %v105
    %v124 = vsel %vm120, %v105, %v47
    %v125 = vsel %vm120, %v76, %v107
    %v126 = vsel %vm120, %v107, %v76
    %v127 = vsel %vm120, %v77, %v109
    %v128 = vsel %vm120, %v109, %v77
    %v129 = vsel %vm120, %v55, %v111
    %v130 = vsel %vm120, %v111, %v55
    %v131 = vsel %vm120, %v78, %v113
    %v132 = vsel %vm120, %v113, %v78
    %v133 = vsel %vm120, %v79, %v115
    %v134 = vsel %vm120, %v115, %v79
    %v135 = vsel %vm120, %v74, %v117
    %v136 = vsel %vm120, %v117, %v74
    %v137 = vrcp.pop %v121
    %v138 = vmul.f32 %v121, %v137
    %v139 = vsub.f32 2.0, %v138
    %v140 = vmul.f32 %v137, %v139
    %v141 = vmul.f32 %v123, %v140
    %v142 = vmul.f32 %v125, %v140
    %v143 = vmul.f32 %v127, %v140
    %v144 = vmul.f32 %v129, %v140
    %v145 = vmul.f32 %v131, %v140
    %v146 = vmul.f32 %v133, %v140
    %v147 = vmul.f32 %v135, %v140
    %v148 = vmul.f32 %v85, %v141
    %v149 = vsub.f32 %v87, %v148
    %v150 = vmul.f32 %v85, %v140
    %v151 = vsub.f32 1.0, %v150
    %v152 = vmul.f32 %v85, %v142
    %v153 = vsub.f32 %v89, %v152
    %v154 = vmul.f32 %v85, %v143
    %v155 = vsub.f32 %v91, %v154
    %v156 = vmul.f32 %v85, %v144
    %v157 = vsub.f32 %v93, %v156
    %v158 = vmul.f32 %v85, %v145
    %v159 = vsub.f32 %v95, %v158
    %v160 = vmul.f32 %v85, %v146
    %v161 = vsub.f32 %v97, %v160
    %v162 = vmul.f32 %v85, %v147
    %v163 = vsub.f32 %v99, %v162
    %v164 = vmul.f32 %v104, %v141
    %v165 = vsub.f32 %v106, %v164
    %v166 = vmul.f32 %v104, %v140
    %v167 = vsub.f32 1.0, %v166
    %v168 = vmul.f32 %v104, %v142
    %v169 = vsub.f32 %v108, %v168
    %v170 = vmul.f32 %v104, %v143
    %v171 = vsub.f32 %v110, %v170
    %v172 = vmul.f32 %v104, %v144
    %v173 = vsub.f32 %v112, %v172
    %v174 = vmul.f32 %v104, %v145
    %v175 = vsub.f32 %v114, %v174
    %v176 = vmul.f32 %v104, %v146
    %v177 = vsub.f32 %v116, %v176
    %v178 = vmul.f32 %v104, %v147
    %v179 = vsub.f32 %v118, %v178
    %v180 = vmul.f32 %v122, %v141
    %v181 = vsub.f32 %v124, %v180
    %v182 = vmul.f32 %v122, %v140
    %v183 = vsub.f32 1.0, %v182
    %v184 = vmul.f32 %v122, %v142
    %v185 = vsub.f32 %v126, %v184
    %v186 = vmul.f32 %v122, %v143
    %v187 = vsub.f32 %v128, %v186
    %v188 = vmul.f32 %v122, %v144
    %v189 = vsub.f32 %v130, %v188
    %v190 = vmul.f32 %v122, %v145
    %v191 = vsub.f32 %v132, %v190
    %v192 = vmul.f32 %v122, %v146
    %v193 = vsub.f32 %v134, %v192
    %v194 = vmul.f32 %v122, %v147
    %v195 = vsub.f32 %v136, %v194
    %v196 = vand.u32 2147483647, %v149
    %v197 = vand.u32 2147483647, %v165
    %vm198 = vcmp.gt.f32.partialorder %v197, %v196
    %v199 = vsel %vm198, %v197, %v196
    %v200 = vsel %vm198, %v165, %v149
    %v201 = vsel %vm198, %v149, %v165
    %v202 = vsel %vm198, %v167, %v151
    %v203 = vsel %vm198, %v151, %v167
    %v204 = vsel %vm198, %v169, %v153
    %v205 = vsel %vm198, %v153, %v169
    %v206 = vsel %vm198, %v171, %v155
    %v207 = vsel %vm198, %v155, %v171
    %v208 = vsel %vm198, %v173, %v157
    %v209 = vsel %vm198, %v157, %v173
    %v210 = vsel %vm198, %v175, %v159
    %v211 = vsel %vm198, %v159, %v175
    %v212 = vsel %vm198, %v177, %v161
    %v213 = vsel %vm198, %v161, %v177
    %v214 = vsel %vm198, %v179, %v163
    %v215 = vsel %vm198, %v163, %v179
    %v216 = vand.u32 2147483647, %v181
    %vm217 = vcmp.gt.f32.partialorder %v216, %v199
    %v218 = vsel %vm217, %v181, %v200
    %v219 = vsel %vm217, %v200, %v181
    %v220 = vsel %vm217, %v183, %v202
    %v221 = vsel %vm217, %v202, %v183
    %v222 = vsel %vm217, %v185, %v204
    %v223 = vsel %vm217, %v204, %v185
    %v224 = vsel %vm217, %v187, %v206
    %v225 = vsel %vm217, %v206, %v187
    %v226 = vsel %vm217, %v189, %v208
    %v227 = vsel %vm217, %v208, %v189
    %v228 = vsel %vm217, %v191, %v210
    %v229 = vsel %vm217, %v210, %v191
    %v230 = vsel %vm217, %v193, %v212
    %v231 = vsel %vm217, %v212, %v193
    %v232 = vsel %vm217, %v195, %v214
    %v233 = vsel %vm217, %v214, %v195
    %v234 = vrcp.pop %v218
    %v235 = vmul.f32 %v218, %v234
    %v236 = vsub.f32 2.0, %v235
    %v237 = vmul.f32 %v234, %v236
    %v238 = vmul.f32 %v220, %v237
    %v239 = vmul.f32 %v222, %v237
    %v240 = vmul.f32 %v224, %v237
    %v241 = vmul.f32 %v226, %v237
    %v242 = vmul.f32 %v228, %v237
    %v243 = vmul.f32 %v230, %v237
    %v244 = vmul.f32 %v232, %v237
    %v245 = vmul.f32 %v201, %v238
    %v246 = vsub.f32 %v203, %v245
    %v247 = vmul.f32 %v201, %v239
    %v248 = vsub.f32 %v205, %v247
    %v249 = vmul.f32 %v201, %v240
    %v250 = vsub.f32 %v207, %v249
    %v251 = vmul.f32 %v201, %v241
    %v252 = vsub.f32 %v209, %v251
    %v253 = vmul.f32 %v201, %v242
    %v254 = vsub.f32 %v211, %v253
    %v255 = vmul.f32 %v201, %v243
    %v256 = vsub.f32 %v213, %v255
    %v257 = vmul.f32 %v201, %v244
    %v258 = vsub.f32 %v215, %v257
    %v259 = vmul.f32 %v219, %v238
    %v260 = vsub.f32 %v221, %v259
    %v261 = vmul.f32 %v219, %v239
    %v262 = vsub.f32 %v223, %v261
    %v263 = vmul.f32 %v219, %v240
    %v264 = vsub.f32 %v225, %v263
    %v265 = vmul.f32 %v219, %v241
    %v266 = vsub.f32 %v227, %v265
    %v267 = vmul.f32 %v219, %v242
    %v268 = vsub.f32 %v229, %v267
    %v269 = vmul.f32 %v219, %v243
    %v270 = vsub.f32 %v231, %v269
    %v271 = vmul.f32 %v219, %v244
    %v272 = vsub.f32 %v233, %v271
    %v273 = vand.u32 2147483647, %v246
    %v274 = vand.u32 2147483647, %v260
    %vm275 = vcmp.gt.f32.partialorder %v274, %v273
    %v276 = vsel %vm275, %v260, %v246
    %v277 = vsel %vm275, %v246, %v260
    %v278 = vsel %vm275, %v262, %v248
    %v279 = vsel %vm275, %v248, %v262
    %v280 = vsel %vm275, %v264, %v250
    %v281 = vsel %vm275, %v250, %v264
    %v282 = vsel %vm275, %v266, %v252
    %v283 = vsel %vm275, %v252, %v266
    %v284 = vsel %vm275, %v268, %v254
    %v285 = vsel %vm275, %v254, %v268
    %v286 = vsel %vm275, %v270, %v256
    %v287 = vsel %vm275, %v256, %v270
    %v288 = vsel %vm275, %v272, %v258
    %v289 = vsel %vm275, %v258, %v272
    %v290 = vrcp.pop %v276
    %v291 = vmul.f32 %v276, %v290
    %v292 = vsub.f32 2.0, %v291
    %v293 = vmul.f32 %v290, %v292
    %v294 = vmul.f32 %v278, %v293
    %v295 = vmul.f32 %v280, %v293
    %v296 = vmul.f32 %v282, %v293
    %v297 = vmul.f32 %v284, %v293
    %v298 = vmul.f32 %v286, %v293
    %v299 = vmul.f32 %v288, %v293
    %v300 = vmul.f32 %v277, %v294
    %v301 = vsub.f32 %v279, %v300
    %v302 = vmul.f32 %v277, %v295
    %v303 = vsub.f32 %v281, %v302
    %v304 = vmul.f32 %v277, %v296
    %v305 = vsub.f32 %v283, %v304
    %v306 = vmul.f32 %v277, %v297
    %v307 = vsub.f32 %v285, %v306
    %v308 = vmul.f32 %v277, %v298
    %v309 = vsub.f32 %v287, %v308
    %v310 = vmul.f32 %v277, %v299
    %v311 = vsub.f32 %v289, %v310
    %v312 = vmul.f32 %v301, %v309
    %v313 = vmul.f32 %v303, %v307
    %v314 = vsub.f32 %v312, %v313
    %v315 = vrcp.pop %v314
    %v316 = vmul.f32 %v314, %v315
    %v317 = vsub.f32 2.0, %v316
    %v318 = vmul.f32 %v315, %v317
    %v319 = vmul.f32 %v305, %v309
    %v320 = vmul.f32 %v303, %v311
    %v321 = vsub.f32 %v319, %v320
    %v322 = vmul.f32 %v321, %v318
    %v323 = vmul.f32 %v301, %v311
    %v324 = vmul.f32 %v305, %v307
    %v325 = vsub.f32 %v323, %v324
    %v326 = vmul.f32 %v325, %v318
    %v327 = vmul.f32 %v294, %v322
    %v328 = vsub.f32 %v296, %v327
    %v329 = vmul.f32 %v295, %v326
    %v330 = vsub.f32 %v328, %v329
    %v331 = vmul.f32 %v297, %v322
    %v332 = vsub.f32 %v299, %v331
    %v333 = vmul.f32 %v298, %v326
    %v334 = vsub.f32 %v332, %v333
    %v335 = vmul.f32 %v238, %v330
    %v336 = vsub.f32 %v241, %v335
    %v337 = vmul.f32 %v239, %v322
    %v338 = vsub.f32 %v336, %v337
    %v339 = vmul.f32 %v240, %v326
    %v340 = vsub.f32 %v338, %v339
    %v341 = vmul.f32 %v238, %v334
    %v342 = vsub.f32 %v244, %v341
    %v343 = vmul.f32 %v242, %v322
    %v344 = vsub.f32 %v342, %v343
    %v345 = vmul.f32 %v243, %v326
    %v346 = vsub.f32 %v344, %v345
    %v347 = vmul.f32 %v141, %v340
    %v348 = vsub.f32 %v144, %v347
    %v349 = vmul.f32 %v140, %v330
    %v350 = vsub.f32 %v348, %v349
    %v351 = vmul.f32 %v142, %v322
    %v352 = vsub.f32 %v350, %v351
    %v353 = vmul.f32 %v143, %v326
    %v354 = vsub.f32 %v352, %v353
    %v355 = vmul.f32 %v141, %v346
    %v356 = vsub.f32 %v147, %v355
    %v357 = vmul.f32 %v140, %v334
    %v358 = vsub.f32 %v356, %v357
    %v359 = vmul.f32 %v145, %v322
    %v360 = vsub.f32 %v358, %v359
    %v361 = vmul.f32 %v146, %v326
    %v362 = vsub.f32 %v360, %v361
    %363 = vst [vmem:[#allocation7] sm:$0xff] %v354
    %s364 = scalar_lea.vmem [#allocation7], 8
    %365 = vst [vmem:[%s364] sm:$0xff] %v340
    %s366 = scalar_lea.vmem [#allocation7], 16
    %367 = vst [vmem:[%s366] sm:$0xff] %v330
    %s368 = scalar_lea.vmem [#allocation7], 24
    %369 = vst [vmem:[%s368] sm:$0xff] %v362
    %s370 = scalar_lea.vmem [#allocation7], 32
    %371 = vst [vmem:[%s370] sm:$0xff] %v346
    %s372 = scalar_lea.vmem [#allocation7], 40
    %373 = vst [vmem:[%s372] sm:$0xff] %v334
    %s374 = scalar_lea.vmem [#allocation7], 48
    %375 = vst [vmem:[%s374] sm:$0xff] %v322
    %s376 = scalar_lea.vmem [#allocation7], 56
    %377 = vst [vmem:[%s376] sm:$0xff] %v326
    %s378 = scalar_lea.vmem [#allocation7], 64
    %379 = vst [vmem:[%s378] sm:$0xff] 1.0
    // Predicated region
    $region18: #{tpu_custom_call.1} parent=1 // pred_check
      _
    $region19: #{tpu_custom_call.1} parent=1 // pred_check_branch
      %381 = sbr.rel (0) target = $region21
    $region20: #{tpu_custom_call.1} parent=1 // pred_region
      %s383 = ssub.s32 1152, 1152
      %384 = vsyncadd [#allocation4], %s383
      %s385 = sshll.u32 [#allocation7], 4
      %s386 = int_to_ptr.vmem [resolvable:$true] %s385
      %391 = dma.vmem_to_hbm [thread:$0]  %s386, 1152, %s2, [#allocation4], 128, 128, 8
    $region21: #{tpu_custom_call.1} parent=1 // pred_fallthru
      _
    // Predicated region
    $region22: #{tpu_custom_call.1} parent=1 // pred_check
      _
    $region23: #{tpu_custom_call.1} parent=1 // pred_check_branch
      %393 = sbr.rel (0) target = $region25
    $region24: #{tpu_custom_call.1} parent=1 // pred_region
      %394 = dma.done [#allocation4], 1152
    $region25: #{tpu_custom_call.1} parent=1 // pred_fallthru
      _
    %395 = vsyncpa [#allocation3], 1
    %396 = vsyncpa [#allocation6], 1
    %397 = vsyncpa [#allocation4], 1

</llo_original>
